<compile_context>
chip_gen: v6e
topology: v6e:2x2x1
jax: 0.10.0
libtpu: 0.0.40
codegen_flags: <defaults>
</compile_context>

<pallas_src>
import jax
import jax.numpy as jnp
import numpy as np
from jax.experimental import pallas as pl
from jax.experimental.pallas import tpu as pltpu


def _conv_bn_silu_kernel(x_ref, w_ref, b_ref, o_ref):
    """One (batch sample, spatial tile) grid step.

    x_ref: (1, C_in,  TM)  input tile, spatial (H*W) flattened onto lanes
    w_ref: (C_out, C_in)   1x1 conv weight with BN scale folded in (resident)
    b_ref: (C_out, 1)      folded BN bias (resident)
    o_ref: (1, C_out, TM)  SiLU(BN(conv(x))) tile -- lane-dense stores
    """
    c_in = x_ref.shape[1]
    x = x_ref[0]            # (C_in, TM)
    w = w_ref[...]          # (C_out, C_in), f32, BN scale already folded in
    b = b_ref[...]          # (C_out, 1)

    if c_in <= 8:
        # Tiny contraction: skip the MXU, do an unrolled VPU FMA in f32.
        y = w[:, 0:1] * x[0:1, :] + b
        for ci in range(1, c_in):
            y = y + w[:, ci:ci + 1] * x[ci:ci + 1, :]
    else:
        # Large channel count: MXU matmul, bf16 operands, f32 accumulation.
        y = jnp.dot(w.astype(jnp.bfloat16), x.astype(jnp.bfloat16),
                    preferred_element_type=jnp.float32) + b

    # SiLU = y * sigmoid(y); reciprocal goes to the (otherwise idle) EUP slot.
    sig = pl.reciprocal(1.0 + jnp.exp(-y), approx=True)
    o_ref[0] = (y * sig).astype(o_ref.dtype)


def _choose_tm(m, c_in, c_out):
    """Largest lane tile keeping double-buffered in+out tiles well under VMEM."""
    budget = 8 * 1024 * 1024                    # bytes for pipelined tiles
    per_lane = 2 * 4 * (c_in + c_out)           # double-buffered f32 in + out columns
    tm = min(budget // per_lane, 8192)
    tm = max(128, (tm // 128) * 128)            # lane-aligned
    if tm >= m:
        return m                                # single full-row block (always legal)
    return tm


def conv1x1_bn_silu(x, w_scaled, bias, *, tm=None):
    """x: (N, C_in, M) -> (N, C_out, M) with M = H*W (lanes).

    Computes SiLU(scale * conv1x1(x) + bias) with the BN scale pre-folded into
    `w_scaled` (C_out, C_in).  `bias` is (C_out,).
    """
    n, c_in, m = x.shape
    c_out = w_scaled.shape[0]
    if tm is None:
        tm = _choose_tm(m, c_in, c_out)
    n_tiles = pl.cdiv(m, tm)

    cost = pl.CostEstimate(
        flops=2 * n * m * c_in * c_out,
        transcendentals=n * m * c_out,
        bytes_accessed=4 * (n * m * c_in + n * m * c_out + c_in * c_out + c_out),
    )

    return pl.pallas_call(
        _conv_bn_silu_kernel,
        out_shape=jax.ShapeDtypeStruct((n, c_out, m), x.dtype),
        grid_spec=pltpu.PrefetchScalarGridSpec(
            num_scalar_prefetch=0,
            grid=(n, n_tiles),
            in_specs=[
                pl.BlockSpec((1, c_in, tm), lambda b, i: (b, 0, i)),
                pl.BlockSpec((c_out, c_in), lambda b, i: (0, 0)),
                pl.BlockSpec((c_out, 1), lambda b, i: (0, 0)),
            ],
            out_specs=pl.BlockSpec((1, c_out, tm), lambda b, i: (b, 0, i)),
        ),
        compiler_params=pltpu.CompilerParams(
            dimension_semantics=("parallel", "parallel"),
        ),
        cost_estimate=cost,
    )(x, w_scaled, bias.reshape(c_out, 1))


def upsample_forward(x_nchw, conv_w, bn_gamma, bn_beta, bn_mean, bn_var, eps=1e-5):
    """Forward of Upsample: SiLU(BN(Conv1x1(x))) then nearest upsample x2.

    NCHW in / NCHW out, matching the PyTorch module.
    """
    n, c_in, h, w = x_nchw.shape
    c_out = conv_w.shape[0]

    # Fold inference BatchNorm into the conv: scale*(W@x) == (scale*W)@x.
    scale = bn_gamma / jnp.sqrt(bn_var + eps)
    bias = bn_beta - bn_mean * scale
    w_scaled = (conv_w.reshape(c_out, c_in) * scale[:, None]).astype(jnp.float32)

    # NCHW is already channel-major: flattening spatial gives a lane-dense
    # (C, H*W) matrix per sample.  No transposes anywhere.
    x3 = x_nchw.reshape(n, c_in, h * w)
    y = conv1x1_bn_silu(x3, w_scaled, bias)            # (N, C_out, H*W), Pallas
    y = y.reshape(n, c_out, h, w)                      # free (contiguous) reshape

    # Nearest-neighbour 2x upsample: one fused XLA broadcast+reshape pass,
    # still NCHW so no relayout of the 4x tensor is needed.
    up = jnp.broadcast_to(y[:, :, :, None, :, None], (n, c_out, h, 2, w, 2))
    return up.reshape(n, c_out, 2 * h, 2 * w)


def _reference_forward(x_nchw, conv_w, bn_gamma, bn_beta, bn_mean, bn_var, eps=1e-5):
    """Pure-JAX reference (same math, no Pallas) for a sanity check."""
    w = conv_w.reshape(conv_w.shape[0], conv_w.shape[1])          # (C_out, C_in)
    y = jnp.einsum("nchw,oc->nohw", x_nchw, w)
    scale = bn_gamma / jnp.sqrt(bn_var + eps)
    bias = bn_beta - bn_mean * scale
    y = y * scale[None, :, None, None] + bias[None, :, None, None]
    y = y * jax.nn.sigmoid(y)
    y = jnp.repeat(jnp.repeat(y, 2, axis=2), 2, axis=3)
    return y


if __name__ == "__main__":
    key = jax.random.PRNGKey(0)
    k_x, k_w, k_g, k_b, k_m, k_v = jax.random.split(key, 6)

    N, C_IN, C_OUT, H, W = 2, 4, 8, 16, 16

    # Deterministic synthetic parameters (shapes match nn.Conv2d / nn.BatchNorm2d).
    x = jax.random.normal(k_x, (N, C_IN, H, W), dtype=jnp.float32)
    conv_w = jax.random.normal(k_w, (C_OUT, C_IN, 1, 1), dtype=jnp.float32) * 0.1
    bn_gamma = 1.0 + 0.1 * jax.random.normal(k_g, (C_OUT,), dtype=jnp.float32)
    bn_beta = 0.1 * jax.random.normal(k_b, (C_OUT,), dtype=jnp.float32)
    bn_mean = 0.1 * jax.random.normal(k_m, (C_OUT,), dtype=jnp.float32)
    bn_var = jnp.abs(jax.random.normal(k_v, (C_OUT,), dtype=jnp.float32)) + 0.5

    out = jax.jit(upsample_forward)(x, conv_w, bn_gamma, bn_beta, bn_mean, bn_var)
    out = jax.block_until_ready(out)

    assert out.shape == (N, C_OUT, 2 * H, 2 * W), out.shape

    ref = _reference_forward(x, conv_w, bn_gamma, bn_beta, bn_mean, bn_var)
    # Slightly looser tolerance than pure f32 to cover the EUP approximate
    # reciprocal used for the SiLU sigmoid.
    np.testing.assert_allclose(np.asarray(out), np.asarray(ref), rtol=2e-3, atol=2e-3)

    print("KERNEL_OK")
</pallas_src>

<mosaic_0001>
module attributes {stable_mosaic.version = 11 : i64} {
  func.func @_conv_bn_silu_kernel(%arg0: i32, %arg1: i32, %arg2: memref<1x4x256xf32, #tpu.memory_space<vmem>>, %arg3: memref<8x4xf32, #tpu.memory_space<vmem>>, %arg4: memref<8x1xf32, #tpu.memory_space<vmem>>, %arg5: memref<1x8x256xf32, #tpu.memory_space<vmem>>) attributes {dimension_semantics = [#tpu.dimension_semantics<parallel>, #tpu.dimension_semantics<parallel>], iteration_bounds = array<i64: 2, 1>, scalar_prefetch = 0 : i64, scratch_operands = 0 : i64, tpu.core_type = #tpu.core_type<tc>, window_params = [{transform_indices = @transform_0, window_bounds = array<i64: 1, 4, 256>}, {pipeline_mode = #tpu.pipeline_mode<synchronous>, transform_indices = @transform_1, window_bounds = array<i64: 8, 4>}, {pipeline_mode = #tpu.pipeline_mode<synchronous>, transform_indices = @transform_2, window_bounds = array<i64: 8, 1>}, {transform_indices = @transform_3, window_bounds = array<i64: 1, 8, 256>}]} {
    %c0 = arith.constant 0 : index
    %c0_0 = arith.constant 0 : index
    %c0_1 = arith.constant 0 : index
    %0 = vector.load %arg2[%c0, %c0_0, %c0_1] : memref<1x4x256xf32, #tpu.memory_space<vmem>>, vector<1x4x256xf32>
    %1 = vector.shape_cast %0 : vector<1x4x256xf32> to vector<4x256xf32>
    %c0_2 = arith.constant 0 : index
    %c0_3 = arith.constant 0 : index
    %2 = vector.load %arg3[%c0_2, %c0_3] : memref<8x4xf32, #tpu.memory_space<vmem>>, vector<8x4xf32>
    %c0_4 = arith.constant 0 : index
    %c0_5 = arith.constant 0 : index
    %3 = vector.load %arg4[%c0_4, %c0_5] : memref<8x1xf32, #tpu.memory_space<vmem>>, vector<8x1xf32>
    %4 = vector.extract_strided_slice %2 {offsets = [0, 0], sizes = [8, 1], strides = [1, 1]} : vector<8x4xf32> to vector<8x1xf32>
    %5 = vector.extract_strided_slice %1 {offsets = [0, 0], sizes = [1, 256], strides = [1, 1]} : vector<4x256xf32> to vector<1x256xf32>
    %6 = vector.broadcast %4 : vector<8x1xf32> to vector<8x256xf32>
    %7 = vector.broadcast %5 : vector<1x256xf32> to vector<8x256xf32>
    %8 = arith.mulf %6, %7 : vector<8x256xf32>
    %9 = vector.broadcast %3 : vector<8x1xf32> to vector<8x256xf32>
    %10 = arith.addf %8, %9 : vector<8x256xf32>
    %11 = vector.extract_strided_slice %2 {offsets = [0, 1], sizes = [8, 1], strides = [1, 1]} : vector<8x4xf32> to vector<8x1xf32>
    %12 = vector.extract_strided_slice %1 {offsets = [1, 0], sizes = [1, 256], strides = [1, 1]} : vector<4x256xf32> to vector<1x256xf32>
    %13 = vector.broadcast %11 : vector<8x1xf32> to vector<8x256xf32>
    %14 = vector.broadcast %12 : vector<1x256xf32> to vector<8x256xf32>
    %15 = arith.mulf %13, %14 : vector<8x256xf32>
    %16 = arith.addf %10, %15 : vector<8x256xf32>
    %17 = vector.extract_strided_slice %2 {offsets = [0, 2], sizes = [8, 1], strides = [1, 1]} : vector<8x4xf32> to vector<8x1xf32>
    %18 = vector.extract_strided_slice %1 {offsets = [2, 0], sizes = [1, 256], strides = [1, 1]} : vector<4x256xf32> to vector<1x256xf32>
    %19 = vector.broadcast %17 : vector<8x1xf32> to vector<8x256xf32>
    %20 = vector.broadcast %18 : vector<1x256xf32> to vector<8x256xf32>
    %21 = arith.mulf %19, %20 : vector<8x256xf32>
    %22 = arith.addf %16, %21 : vector<8x256xf32>
    %23 = vector.extract_strided_slice %2 {offsets = [0, 3], sizes = [8, 1], strides = [1, 1]} : vector<8x4xf32> to vector<8x1xf32>
    %24 = vector.extract_strided_slice %1 {offsets = [3, 0], sizes = [1, 256], strides = [1, 1]} : vector<4x256xf32> to vector<1x256xf32>
    %25 = vector.broadcast %23 : vector<8x1xf32> to vector<8x256xf32>
    %26 = vector.broadcast %24 : vector<1x256xf32> to vector<8x256xf32>
    %27 = arith.mulf %25, %26 : vector<8x256xf32>
    %28 = arith.addf %22, %27 : vector<8x256xf32>
    %cst = arith.constant 0.000000e+00 : f32
    %29 = vector.broadcast %cst : f32 to vector<8x256xf32>
    %30 = arith.subf %29, %28 : vector<8x256xf32>
    %31 = math.exp %30 : vector<8x256xf32>
    %cst_6 = arith.constant 1.000000e+00 : f32
    %32 = vector.broadcast %cst_6 : f32 to vector<8x256xf32>
    %33 = arith.addf %32, %31 : vector<8x256xf32>
    %34 = tpu.reciprocal %33 {approx = true} : vector<8x256xf32> -> vector<8x256xf32>
    %35 = arith.mulf %28, %34 : vector<8x256xf32>
    %c0_7 = arith.constant 0 : index
    %c0_8 = arith.constant 0 : index
    %c0_9 = arith.constant 0 : index
    %36 = vector.load %arg5[%c0_7, %c0_8, %c0_9] : memref<1x8x256xf32, #tpu.memory_space<vmem>>, vector<1x8x256xf32>
    %37 = vector.shape_cast %36 : vector<1x8x256xf32> to vector<8x256xf32>
    %38 = vector.shape_cast %35 : vector<8x256xf32> to vector<1x8x256xf32>
    tpu.vector_store %arg5[%c0_7, %c0_8, %c0_9], %38 {strides = array<i32>} : memref<1x8x256xf32, #tpu.memory_space<vmem>>, vector<1x8x256xf32>,
    return
  }
  func.func @transform_0(%arg0: i32, %arg1: i32) -> (i32, i32, i32) {
    %c0_i32 = arith.constant 0 : i32
    %c0_i32_0 = arith.constant 0 : i32
    return %arg0, %c0_i32, %arg1 : i32, i32, i32
  }
  func.func @transform_1(%arg0: i32, %arg1: i32) -> (i32, i32) {
    %c0_i32 = arith.constant 0 : i32
    %c0_i32_0 = arith.constant 0 : i32
    %c0_i32_1 = arith.constant 0 : i32
    return %c0_i32, %c0_i32_0 : i32, i32
  }
  func.func @transform_2(%arg0: i32, %arg1: i32) -> (i32, i32) {
    %c0_i32 = arith.constant 0 : i32
    %c0_i32_0 = arith.constant 0 : i32
    %c0_i32_1 = arith.constant 0 : i32
    return %c0_i32, %c0_i32_0 : i32, i32
  }
  func.func @transform_3(%arg0: i32, %arg1: i32) -> (i32, i32, i32) {
    %c0_i32 = arith.constant 0 : i32
    %c0_i32_0 = arith.constant 0 : i32
    return %arg0, %c0_i32, %arg1 : i32, i32, i32
  }
}

</mosaic_0001>

<llo_original>
// kernel: upsample_forward.1
$region0: #{upsample_forward.1}
  #allocation0 [shape = 'u32[]', space=smem, size = 0x4, offset = 0x4, fixed_abs, tag = 'smem constant byte address 0x4 - core index']
  #allocation1 [shape = 'u32[144,128]{1,0:T(1,128)}', space=vmem, size = 0x12000, scoped, tag = 'internal scratch']
  %s0 = inlined_call_operand.vmem [shape: f32[2,4,256], index: 0, kind: input, shape index: {}]
  %s1 = inlined_call_operand.vmem [shape: f32[8,4], index: 1, kind: input, shape index: {}]
  %s2 = inlined_call_operand.vmem [shape: f32[8,1], index: 2, kind: input, shape index: {}]
  %s3 = inlined_call_operand.vmem [shape: f32[2,8,256], index: 3, kind: output, shape index: {}]
  %s4 = sld [smem:[#allocation0]]
  $region45: #{upsample_forward.1} parent=0
    _
  %s6 = ssub.s32 1, %s4
  %s7 = scalar_select 0, %s6, %s4
  loop: start=0, step=1, limit=4
  $region2: #{upsample_forward.1} parent=0 // loop_pre_header
    _
  $region3: #{upsample_forward.1} parent=0 // loop_header
    %s9 = sphi 0, %s13
    %p10 = scmp.ge.s32.totalorder %s9, 4
    %s16 = sphi 0, %s28
    %s17 = sphi 0, %s24
    %s18 = sphi 0, %s16
    %s19 = sphi 0, %s17
    %s20 = sphi 0, %s18
    %s21 = sphi 0, %s19
    %s33 = sphi 0, %s35
    %s36 = sphi 0, %s33
    %s37 = sphi 0, %s36
    %s53 = sphi 0, %s37
    %s57 = sphi 0, %s57
    %s59 = sphi 0, %s57
    %s60 = sphi 0, %s59
    %s74 = sphi 0, %s60
    %s78 = sphi 0, %s78
    %s80 = sphi 0, %s78
    %s81 = sphi 0, %s80
    %s95 = sphi 0, %s81
    %s103 = sphi 0, %s105
    %s106 = sphi 0, %s103
    %s107 = sphi 0, %s106
    %s123 = sphi 0, %s107
  $region4: #{upsample_forward.1} parent=0 // loop_header_branch
    %12 = sbr.rel (%p10) target = $region8
  $region5: #{upsample_forward.1} parent=0 // loop_body
    %s14 = ssub.s32 %s9, 1
    %s15 = ssub.s32 %s9, 2
    %s22 = sadd.s32 1, %s17
    %p23 = scmp.ge.s32.totalorder %s22, 1
    %s24 = scalar_select %p23, 0, %s22
    %s25 = sadd.s32 1, %s16
    %s26 = scalar_select %p23, %s25, %s16
    %p27 = scmp.ge.s32.totalorder %s26, 2
    %s28 = scalar_select %p27, 0, %s26
    %s29 = ssub.s32 %s16, %s28
    %s30 = ssub.s32 %s17, %s24
    %s31 = sor.u32 %s29, %s30
    %p32 = scmp.eq.s32.totalorder %s31, 0
    %s34 = sadd.s32 %s33, 1
    %s35 = scalar_select %p32, %s33, %s34
    %p38 = pneg %p32
    %p39 = scmp.eq.s32.totalorder %s9, 1
    %p40 = por %p38, %p39
    %p41 = scmp.ne.s32.totalorder %s33, %s36
    %p42 = scmp.eq.s32.totalorder %s9, 0
    %p43 = por %p41, %p42
    %p44 = scmp.ne.s32.totalorder %s33, %s36
    %p45 = scmp.eq.s32.totalorder %s14, 1
    %p46 = por %p44, %p45
    %p47 = scmp.ne.s32.totalorder %s36, %s37
    %p48 = scmp.eq.s32.totalorder %s14, 0
    %p49 = por %p47, %p48
    %p50 = scmp.ne.s32.totalorder %s36, %s37
    %p51 = scmp.eq.s32.totalorder %s15, 1
    %p52 = por %p50, %p51
    %p54 = scmp.ne.s32.totalorder %s37, %s53
    %p55 = scmp.eq.s32.totalorder %s15, 0
    %p56 = por %p54, %p55
    %s58 = sadd.s32 %s57, 1
    %p61 = scmp.eq.s32.totalorder %s9, 1
    %p62 = scmp.ne.s32.totalorder %s57, %s59
    %p63 = scmp.eq.s32.totalorder %s9, 0
    %p64 = por %p62, %p63
    %p65 = scmp.ne.s32.totalorder %s57, %s59
    %p66 = scmp.eq.s32.totalorder %s14, 1
    %p67 = por %p65, %p66
    %p68 = scmp.ne.s32.totalorder %s59, %s60
    %p69 = scmp.eq.s32.totalorder %s14, 0
    %p70 = por %p68, %p69
    %p71 = scmp.ne.s32.totalorder %s59, %s60
    %p72 = scmp.eq.s32.totalorder %s15, 1
    %p73 = por %p71, %p72
    %p75 = scmp.ne.s32.totalorder %s60, %s74
    %p76 = scmp.eq.s32.totalorder %s15, 0
    %p77 = por %p75, %p76
    %s79 = sadd.s32 %s78, 1
    %p82 = scmp.eq.s32.totalorder %s9, 1
    %p83 = scmp.ne.s32.totalorder %s78, %s80
    %p84 = scmp.eq.s32.totalorder %s9, 0
    %p85 = por %p83, %p84
    %p86 = scmp.ne.s32.totalorder %s78, %s80
    %p87 = scmp.eq.s32.totalorder %s14, 1
    %p88 = por %p86, %p87
    %p89 = scmp.ne.s32.totalorder %s80, %s81
    %p90 = scmp.eq.s32.totalorder %s14, 0
    %p91 = por %p89, %p90
    %p92 = scmp.ne.s32.totalorder %s80, %s81
    %p93 = scmp.eq.s32.totalorder %s15, 1
    %p94 = por %p92, %p93
    %p96 = scmp.ne.s32.totalorder %s81, %s95
    %p97 = scmp.eq.s32.totalorder %s15, 0
    %p98 = por %p96, %p97
    %s99 = ssub.s32 %s16, %s28
    %s100 = ssub.s32 %s17, %s24
    %s101 = sor.u32 %s99, %s100
    %p102 = scmp.eq.s32.totalorder %s101, 0
    %s104 = sadd.s32 %s103, 1
    %s105 = scalar_select %p102, %s103, %s104
    %p108 = pneg %p102
    %p109 = scmp.eq.s32.totalorder %s9, 1
    %p110 = por %p108, %p109
    %p111 = scmp.ne.s32.totalorder %s103, %s106
    %p112 = scmp.eq.s32.totalorder %s9, 0
    %p113 = por %p111, %p112
    %p114 = scmp.ne.s32.totalorder %s103, %s106
    %p115 = scmp.eq.s32.totalorder %s14, 1
    %p116 = por %p114, %p115
    %p117 = scmp.ne.s32.totalorder %s106, %s107
    %p118 = scmp.eq.s32.totalorder %s14, 0
    %p119 = por %p117, %p118
    %p120 = scmp.ne.s32.totalorder %s106, %s107
    %p121 = scmp.eq.s32.totalorder %s15, 1
    %p122 = por %p120, %p121
    %p124 = scmp.ne.s32.totalorder %s107, %s123
    %p125 = scmp.eq.s32.totalorder %s15, 0
    %p126 = por %p124, %p125
    %p127 = scmp.le.s32.totalorder 1, %s9
    %p128 = scmp.lt.s32.totalorder %s9, 3
    %p129 = pnand %p127, %p128
    %p130 = pneg %p129
    // Predicated region
    $region9: #{upsample_forward.1} parent=5 // pred_check
      _
    $region10: #{upsample_forward.1} parent=5 // pred_check_branch
      %132 = sbr.rel (%p129) target = $region12
    $region11: #{upsample_forward.1} parent=5 // pred_region
      %s133 = ssub.s32 %s9, 1
      // Predicated region
      $region13: #{upsample_forward.1} parent=11 // pred_check
        %p134 = pneg %p70
      $region14: #{upsample_forward.1} parent=11 // pred_check_branch
        %136 = sbr.rel (%p134) target = $region16
      $region15: #{upsample_forward.1} parent=11 // pred_region
        _
      $region16: #{upsample_forward.1} parent=11 // pred_fallthru
        _
      // Predicated region
      $region17: #{upsample_forward.1} parent=11 // pred_check
        %p137 = pneg %p91
      $region18: #{upsample_forward.1} parent=11 // pred_check_branch
        %139 = sbr.rel (%p137) target = $region20
      $region19: #{upsample_forward.1} parent=11 // pred_region
        _
      $region20: #{upsample_forward.1} parent=11 // pred_fallthru
        _
    $region12: #{upsample_forward.1} parent=5 // pred_fallthru
      _
    %p140 = scmp.lt.s32.totalorder %s9, 2
    // Predicated region
    $region21: #{upsample_forward.1} parent=5 // pred_check
      %p141 = pneg %p140
    $region22: #{upsample_forward.1} parent=5 // pred_check_branch
      %143 = sbr.rel (%p141) target = $region24
    $region23: #{upsample_forward.1} parent=5 // pred_region
      // Predicated region
      $region25: #{upsample_forward.1} parent=23 // pred_check
        %p144 = pneg %p43
      $region26: #{upsample_forward.1} parent=23 // pred_check_branch
        %146 = sbr.rel (%p144) target = $region28
      $region27: #{upsample_forward.1} parent=23 // pred_region
        %s147 = smul.u32 2, %s17
        %p148 = scmp.lt.s32.totalorder %s16, 1
        %s149 = scalar_select %p148, %s16, 1
        %p150 = scmp.lt.s32.totalorder %s147, 1
        %s151 = scalar_select %p150, %s147, 1
        %s152 = smul.addr %s149, 2
        %s153 = sadd.s32 %s151, %s152
        %s154 = smul.addr %s153, 4
        %s155 = scalar_lea.vmem %s0, %s154
        %s156 = smul.u32 2, %s17
      $region28: #{upsample_forward.1} parent=23 // pred_fallthru
        _
    $region24: #{upsample_forward.1} parent=5 // pred_fallthru
      _
    %p157 = scmp.le.s32.totalorder 1, %s9
    %p158 = scmp.lt.s32.totalorder %s9, 3
    %p159 = pnand %p157, %p158
    %p160 = pneg %p159
    // Predicated region
    $region29: #{upsample_forward.1} parent=5 // pred_check
      _
    $region30: #{upsample_forward.1} parent=5 // pred_check_branch
      %162 = sbr.rel (%p159) target = $region32
    $region31: #{upsample_forward.1} parent=5 // pred_region
      %s163 = ssub.s32 %s9, 1
      %s164 = smul.u32 2, %s19
      %p165 = scmp.lt.s32.totalorder %s18, 1
      %s166 = scalar_select %p165, %s18, 1
      %p167 = scmp.lt.s32.totalorder %s164, 1
      %s168 = scalar_select %p167, %s164, 1
      %s169 = smul.addr %s166, 2
      %s170 = sadd.s32 %s168, %s169
      %s171 = smul.addr %s170, 4
      %s172 = scalar_lea.vmem %s0, %s171
      %p173 = pneg %p49
      %p174 = pneg %p46
      %p175 = pneg %p70
      %p176 = pneg %p67
      %p177 = pneg %p91
      %p178 = pneg %p88
      %p179 = pneg %p119
      %p180 = pneg %p116
      %s181 = smul.u32 2, %s19
      %p182 = scmp.lt.s32.totalorder %s18, 1
      %s183 = scalar_select %p182, %s18, 1
      %p184 = scmp.lt.s32.totalorder %s181, 1
      %s185 = scalar_select %p184, %s181, 1
      %s186 = smul.addr %s183, 2
      %s187 = sadd.s32 %s185, %s186
      %s188 = smul.addr %s187, 8
      %s189 = scalar_lea.vmem %s3, %s188
      %s190 = smul.u32 2, %s19
      %p191 = scmp.lt.s32.totalorder %s18, 1
      %s192 = scalar_select %p191, %s18, 1
      %p193 = scmp.lt.s32.totalorder %s190, 1
      %s194 = scalar_select %p193, %s190, 1
      %s195 = smul.addr %s192, 2
      %s196 = sadd.s32 %s194, %s195
      %s197 = smul.addr %s196, 4
      %s198 = scalar_lea.vmem %s0, %s197
      %s199 = smul.u32 2, %s19
      %s200 = smul.u32 2, %s19
      %p201 = scmp.lt.s32.totalorder %s18, 1
      %s202 = scalar_select %p201, %s18, 1
      %p203 = scmp.lt.s32.totalorder %s200, 1
      %s204 = scalar_select %p203, %s200, 1
      %s205 = smul.addr %s202, 2
      %s206 = sadd.s32 %s204, %s205
      %s207 = smul.addr %s206, 8
      %s208 = scalar_lea.vmem %s3, %s207
      %s209 = smul.u32 2, %s19
      %v210 = vld [vmem:[%s198] sm:$0xff]
      %v211 = vld [vmem:[%s1] sm:$0xff]
      %v212 = vld [vmem:[%s2] sm:$0xff]
      %214 = vset.pattern.permute.xlu0 0
      %215 = vperm.xlu0 %214, %v211
      %v216 = vpop.permute.xlu0 %215
      %v219 = vlaneseq
      %v220 = vshrl.u32 %v219, 7
      %v221 = vsub.s32 0, %v220
      %v222 = vrot.slane %v210, %v221
      %v223 = vlaneseq
      %v224 = vshrl.u32 %v223, 7
      %v225 = vsub.s32 4, %v224
      %v226 = vrot.slane %v210, %v225
      %v229 = vlaneseq
      %v230 = vshrl.u32 %v229, 7
      %v231 = vsub.s32 0, %v230
      %v232 = vrot.slane %v222, %v231
      %v233 = vlaneseq
      %v234 = vshrl.u32 %v233, 7
      %v235 = vsub.s32 0, %v234
      %v236 = vrot.slane %v226, %v235
      %v237 = vmul.f32 %v216, %v232
      %v238 = vmul.f32 %v216, %v236
      %240 = vset.pattern.permute.xlu0 0
      %241 = vperm.xlu0 %240, %v212
      %v242 = vpop.permute.xlu0 %241
      %v244 = vadd.f32 %v237, %v242
      %v245 = vadd.f32 %v238, %v242
      %246 = vset.pattern.permute.xlu0 1
      %247 = vperm.xlu0 %246, %v211
      %v248 = vpop.permute.xlu0 %247
      %v250 = vlaneseq
      %v251 = vshrl.u32 %v250, 7
      %v252 = vsub.s32 1, %v251
      %v253 = vrot.slane %v210, %v252
      %v254 = vlaneseq
      %v255 = vshrl.u32 %v254, 7
      %v256 = vsub.s32 5, %v255
      %v257 = vrot.slane %v210, %v256
      %v260 = vlaneseq
      %v261 = vshrl.u32 %v260, 7
      %v262 = vsub.s32 1, %v261
      %v263 = vrot.slane %v253, %v262
      %v264 = vlaneseq
      %v265 = vshrl.u32 %v264, 7
      %v266 = vsub.s32 1, %v265
      %v267 = vrot.slane %v257, %v266
      %v268 = vmul.f32 %v248, %v263
      %v269 = vmul.f32 %v248, %v267
      %v270 = vadd.f32 %v244, %v268
      %v271 = vadd.f32 %v245, %v269
      %272 = vset.pattern.permute.xlu0 2
      %273 = vperm.xlu0 %272, %v211
      %v274 = vpop.permute.xlu0 %273
      %v276 = vlaneseq
      %v277 = vshrl.u32 %v276, 7
      %v278 = vsub.s32 2, %v277
      %v279 = vrot.slane %v210, %v278
      %v280 = vlaneseq
      %v281 = vshrl.u32 %v280, 7
      %v282 = vsub.s32 6, %v281
      %v283 = vrot.slane %v210, %v282
      %v286 = vlaneseq
      %v287 = vshrl.u32 %v286, 7
      %v288 = vsub.s32 2, %v287
      %v289 = vrot.slane %v279, %v288
      %v290 = vlaneseq
      %v291 = vshrl.u32 %v290, 7
      %v292 = vsub.s32 2, %v291
      %v293 = vrot.slane %v283, %v292
      %v294 = vmul.f32 %v274, %v289
      %v295 = vmul.f32 %v274, %v293
      %v296 = vadd.f32 %v270, %v294
      %v297 = vadd.f32 %v271, %v295
      %298 = vset.pattern.permute.xlu0 3
      %299 = vperm.xlu0 %298, %v211
      %v300 = vpop.permute.xlu0 %299
      %v302 = vlaneseq
      %v303 = vshrl.u32 %v302, 7
      %v304 = vsub.s32 3, %v303
      %v305 = vrot.slane %v210, %v304
      %v306 = vlaneseq
      %v307 = vshrl.u32 %v306, 7
      %v308 = vsub.s32 7, %v307
      %v309 = vrot.slane %v210, %v308
      %v312 = vlaneseq
      %v313 = vshrl.u32 %v312, 7
      %v314 = vsub.s32 3, %v313
      %v315 = vrot.slane %v305, %v314
      %v316 = vlaneseq
      %v317 = vshrl.u32 %v316, 7
      %v318 = vsub.s32 3, %v317
      %v319 = vrot.slane %v309, %v318
      %v320 = vmul.f32 %v300, %v315
      %v321 = vmul.f32 %v300, %v319
      %v322 = vadd.f32 %v296, %v320
      %v323 = vadd.f32 %v297, %v321
      %v324 = vsub.f32 0.0, %v322
      %v325 = vsub.f32 0.0, %v323
      %v326 = vmul.f32 %v324, 1.442695
      %v327 = vpow.pop %v326
      %v328 = vmul.f32 %v325, 1.442695
      %v329 = vpow.pop %v328
      %v330 = vadd.f32 %v327, 1.0
      %v331 = vadd.f32 %v329, 1.0
      %v332 = vrcp.pop %v330
      %v333 = vrcp.pop %v331
      %v334 = vmul.f32 %v322, %v332
      %v335 = vmul.f32 %v323, %v333
      %336 = vst [vmem:[%s208] sm:$0xff] %v334
      %337 = vst [vmem:[%s208 + $0x8] sm:$0xff] %v335
      %s338 = smul.u32 2, %s19
      %p339 = scmp.lt.s32.totalorder %s18, 1
      %s340 = scalar_select %p339, %s18, 1
      %p341 = scmp.lt.s32.totalorder %s338, 1
      %s342 = scalar_select %p341, %s338, 1
      %s343 = smul.addr %s340, 2
      %s344 = sadd.s32 %s342, %s343
      %s345 = smul.addr %s344, 8
      %s346 = scalar_lea.vmem %s3, %s345
      // Predicated region
      $region33: #{upsample_forward.1} parent=31 // pred_check
        %p347 = pneg %p116
      $region34: #{upsample_forward.1} parent=31 // pred_check_branch
        %349 = sbr.rel (%p347) target = $region36
      $region35: #{upsample_forward.1} parent=31 // pred_region
        %s350 = smul.u32 2, %s19
      $region36: #{upsample_forward.1} parent=31 // pred_fallthru
        _
    $region32: #{upsample_forward.1} parent=5 // pred_fallthru
      _
    %p351 = scmp.le.s32.totalorder 2, %s9
    // Predicated region
    $region37: #{upsample_forward.1} parent=5 // pred_check
      %p352 = pneg %p351
    $region38: #{upsample_forward.1} parent=5 // pred_check_branch
      %354 = sbr.rel (%p352) target = $region40
    $region39: #{upsample_forward.1} parent=5 // pred_region
      %s355 = ssub.s32 %s9, 2
      // Predicated region
      $region41: #{upsample_forward.1} parent=39 // pred_check
        %p356 = pneg %p122
      $region42: #{upsample_forward.1} parent=39 // pred_check_branch
        %358 = sbr.rel (%p356) target = $region44
      $region43: #{upsample_forward.1} parent=39 // pred_region
        %s359 = smul.u32 2, %s21
        %p360 = scmp.lt.s32.totalorder %s20, 1
        %s361 = scalar_select %p360, %s20, 1
        %p362 = scmp.lt.s32.totalorder %s359, 1
        %s363 = scalar_select %p362, %s359, 1
        %s364 = smul.addr %s361, 2
        %s365 = sadd.s32 %s363, %s364
        %s366 = smul.addr %s365, 8
        %s367 = scalar_lea.vmem %s3, %s366
      $region44: #{upsample_forward.1} parent=39 // pred_fallthru
        _
    $region40: #{upsample_forward.1} parent=5 // pred_fallthru
      _
  $region6: #{upsample_forward.1} parent=0 // loop_footer
    %s13 = sadd.s32 1, %s9
  $region7: #{upsample_forward.1} parent=0 // loop_footer_branch
    %8 = sbr.rel target = $region3
  $region8: #{upsample_forward.1} parent=0 // loop_exit
    _

</llo_original>
